<compile_context>
chip_gen: v5e
topology: v5e:2x2
jax: 0.10.0
libtpu: 0.0.40
codegen_flags: <defaults>
</compile_context>

<pallas_src>
import jax
import jax.numpy as jnp
from jax.experimental import pallas as pl
from jax.experimental.pallas import tpu as pltpu


def _linear_kernel(x_ref, w_ref, b_ref, o_ref):
    # x_ref: (Bt, F), w_ref: (F, A), b_ref: (1, A), o_ref: (Bt, A)
    acc = jnp.dot(x_ref[...], w_ref[...], preferred_element_type=jnp.float32)
    o_ref[...] = (acc + b_ref[...]).astype(o_ref.dtype)


def _linear_greedy_kernel(x_ref, w_ref, b_ref, o_ref, a_ref):
    # Same linear, plus a fused greedy-action argmax over the action (lane) axis.
    acc = jnp.dot(x_ref[...], w_ref[...], preferred_element_type=jnp.float32)
    q = acc + b_ref[...]
    o_ref[...] = q.astype(o_ref.dtype)
    # argmax(q, axis=-1) with first-occurrence tie-break, via max + masked min-index.
    lane = jax.lax.broadcasted_iota(jnp.int32, q.shape, 1).astype(jnp.float32)
    q_max = jnp.max(q, axis=-1, keepdims=True)
    cand = jnp.where(q >= q_max, lane, jnp.float32(1e9))
    a_ref[...] = jnp.min(cand, axis=-1, keepdims=True).astype(jnp.int32)


def _cost(B, F, A):
    return pl.CostEstimate(
        flops=2 * B * F * A,
        transcendentals=0,
        bytes_accessed=4 * (B * F + F * A + B * A + A),
    )


def dqn_forward(x, w_t, b, *, block_b=512):
    """Q-values. x: (B,F) f32, w_t: (F,A) f32 (= torch weight.T), b: (1,A) f32 -> (B,A)."""
    B, F = x.shape
    _, A = w_t.shape
    cost = _cost(B, F, A)

    if B <= block_b:
        # Whole working set is a few KiB: skip the grid/pipeline machinery entirely.
        return pl.pallas_call(
            _linear_kernel,
            out_shape=jax.ShapeDtypeStruct((B, A), jnp.float32),
            in_specs=[pl.BlockSpec(memory_space=pltpu.MemorySpace.VMEM)] * 3,
            out_specs=pl.BlockSpec(memory_space=pltpu.MemorySpace.VMEM),
            cost_estimate=cost,
        )(x, w_t, b)

    # Large batch: tile only the batch dim; weight/bias pinned in VMEM across steps.
    tb = block_b
    return pl.pallas_call(
        _linear_kernel,
        out_shape=jax.ShapeDtypeStruct((B, A), jnp.float32),
        grid=(pl.cdiv(B, tb),),
        in_specs=[
            pl.BlockSpec((tb, F), lambda i: (i, 0)),
            pl.BlockSpec((F, A), lambda i: (0, 0)),
            pl.BlockSpec((1, A), lambda i: (0, 0)),
        ],
        out_specs=pl.BlockSpec((tb, A), lambda i: (i, 0)),
        compiler_params=pltpu.CompilerParams(dimension_semantics=("parallel",)),
        cost_estimate=cost,
    )(x, w_t, b)


def dqn_forward_greedy(x, w_t, b, *, block_b=512):
    """Fused forward + greedy action. Returns (q: (B,A) f32, action: (B,1) i32)."""
    B, F = x.shape
    _, A = w_t.shape
    cost = _cost(B, F, A)
    out_shapes = (jax.ShapeDtypeStruct((B, A), jnp.float32),
                  jax.ShapeDtypeStruct((B, 1), jnp.int32))

    if B <= block_b:
        return pl.pallas_call(
            _linear_greedy_kernel,
            out_shape=out_shapes,
            in_specs=[pl.BlockSpec(memory_space=pltpu.MemorySpace.VMEM)] * 3,
            out_specs=(pl.BlockSpec(memory_space=pltpu.MemorySpace.VMEM),
                       pl.BlockSpec(memory_space=pltpu.MemorySpace.VMEM)),
            cost_estimate=cost,
        )(x, w_t, b)

    tb = block_b
    return pl.pallas_call(
        _linear_greedy_kernel,
        out_shape=out_shapes,
        grid=(pl.cdiv(B, tb),),
        in_specs=[
            pl.BlockSpec((tb, F), lambda i: (i, 0)),
            pl.BlockSpec((F, A), lambda i: (0, 0)),
            pl.BlockSpec((1, A), lambda i: (0, 0)),
        ],
        out_specs=(pl.BlockSpec((tb, A), lambda i: (i, 0)),
                   pl.BlockSpec((tb, 1), lambda i: (i, 0))),
        compiler_params=pltpu.CompilerParams(dimension_semantics=("parallel",)),
        cost_estimate=cost,
    )(x, w_t, b)


def init_dqn_params(key, n_features, n_actions):
    """Deterministic init mimicking nn.Linear default (uniform +/- 1/sqrt(fan_in))."""
    kw, kb = jax.random.split(key)
    bound = 1.0 / jnp.sqrt(jnp.float32(n_features))
    # PyTorch weight shape is (n_actions, n_features); we store its transpose.
    w_t = jax.random.uniform(kw, (n_features, n_actions), jnp.float32,
                             minval=-bound, maxval=bound)
    b = jax.random.uniform(kb, (1, n_actions), jnp.float32,
                           minval=-bound, maxval=bound)
    return w_t, b


if __name__ == "__main__":
    n_features, n_actions = 32, 4
    key = jax.random.PRNGKey(0)
    kx, kp, kx2 = jax.random.split(key, 3)
    w_t, b = init_dqn_params(kp, n_features, n_actions)

    # 1) Tiny act()-style batch -> gridless whole-array-VMEM path.
    batch = 8
    x = jax.random.normal(kx, (batch, n_features), jnp.float32)
    q = jax.block_until_ready(dqn_forward(x, w_t, b))
    ref = x @ w_t + b
    assert q.shape == (batch, n_actions)
    assert jnp.allclose(q, ref, atol=1e-5, rtol=1e-5)

    # 2) Fused forward + greedy-action epilogue in the same dispatch.
    q2, act = dqn_forward_greedy(x, w_t, b)
    q2, act = jax.block_until_ready((q2, act))
    assert jnp.allclose(q2, ref, atol=1e-5, rtol=1e-5)
    assert jnp.array_equal(act[:, 0], jnp.argmax(ref, axis=-1).astype(jnp.int32))

    # 3) Training-sized batch -> batch-tiled, megacore-parallel path (4 tiles of 256).
    big_batch = 1024
    xb = jax.random.normal(kx2, (big_batch, n_features), jnp.float32)
    qb = jax.block_until_ready(dqn_forward(xb, w_t, b, block_b=256))
    refb = xb @ w_t + b
    assert qb.shape == (big_batch, n_actions)
    assert jnp.allclose(qb, refb, atol=1e-5, rtol=1e-5)

    print("KERNEL_OK")
</pallas_src>

<mosaic_0001>
module attributes {stable_mosaic.version = 11 : i64} {
  func.func @_linear_kernel(%arg0: memref<8x32xf32, #tpu.memory_space<vmem>>, %arg1: memref<32x4xf32, #tpu.memory_space<vmem>>, %arg2: memref<1x4xf32, #tpu.memory_space<vmem>>, %arg3: memref<8x4xf32, #tpu.memory_space<vmem>>) attributes {dimension_semantics = [], scalar_prefetch = 0 : i64, scratch_operands = 0 : i64, tpu.core_type = #tpu.core_type<tc>} {
    %c0 = arith.constant 0 : index
    %c0_0 = arith.constant 0 : index
    %0 = vector.load %arg0[%c0, %c0_0] : memref<8x32xf32, #tpu.memory_space<vmem>>, vector<8x32xf32>
    %c0_1 = arith.constant 0 : index
    %c0_2 = arith.constant 0 : index
    %1 = vector.load %arg1[%c0_1, %c0_2] : memref<32x4xf32, #tpu.memory_space<vmem>>, vector<32x4xf32>
    %cst = arith.constant dense<0.000000e+00> : vector<8x4xf32>
    %2 = tpu.matmul %0, %1, %cst {dimension_numbers = #tpu.dot_dimension_numbers<[1], [0], [0], [1], [0, 0, 1, 1], [], []>} : vector<8x32xf32>, vector<32x4xf32>, vector<8x4xf32> -> vector<8x4xf32>
    %c0_3 = arith.constant 0 : index
    %c0_4 = arith.constant 0 : index
    %3 = vector.load %arg2[%c0_3, %c0_4] : memref<1x4xf32, #tpu.memory_space<vmem>>, vector<1x4xf32>
    %4 = vector.broadcast %3 : vector<1x4xf32> to vector<8x4xf32>
    %5 = arith.addf %2, %4 : vector<8x4xf32>
    %c0_5 = arith.constant 0 : index
    %c0_6 = arith.constant 0 : index
    %6 = vector.load %arg3[%c0_5, %c0_6] : memref<8x4xf32, #tpu.memory_space<vmem>>, vector<8x4xf32>
    tpu.vector_store %arg3[%c0_5, %c0_6], %5 {strides = array<i32>} : memref<8x4xf32, #tpu.memory_space<vmem>>, vector<8x4xf32>,
    return
  }
}

</mosaic_0001>

<llo_original>
// kernel: tpu_custom_call.1
$region0: #{tpu_custom_call.1}
  #allocation0 [shape = 'u32[]', space=smem, size = 0x4, offset = 0x4, fixed_abs, tag = 'smem constant byte address 0x4 - core index']
  #allocation1 [shape = 'u32[72,128]{1,0:T(1,128)}', space=vmem, size = 0x9000, scoped, tag = 'internal scratch']
  %s0 = inlined_call_operand.vmem [shape: f32[8,32], index: 0, kind: input, shape index: {}]
  %s1 = inlined_call_operand.vmem [shape: f32[32,4], index: 1, kind: input, shape index: {}]
  %s2 = inlined_call_operand.vmem [shape: f32[1,4], index: 2, kind: input, shape index: {}]
  %s3 = inlined_call_operand.vmem [shape: f32[8,4], index: 3, kind: output, shape index: {}]
  %s4 = sld [smem:[#allocation0]]
  $region22: #{tpu_custom_call.1} parent=0
    _
  %s6 = ssub.s32 1, %s4
  %s7 = scalar_select 0, %s6, %s4
  // Predicated region
  $region2: #{tpu_custom_call.1} parent=0 // pred_check
    _
  $region3: #{tpu_custom_call.1} parent=0 // pred_check_branch
    %9 = sbr.rel (0) target = $region5
  $region4: #{tpu_custom_call.1} parent=0 // pred_region
    _
  $region5: #{tpu_custom_call.1} parent=0 // pred_fallthru
    _
  // Predicated region
  $region6: #{tpu_custom_call.1} parent=0 // pred_check
    _
  $region7: #{tpu_custom_call.1} parent=0 // pred_check_branch
    %11 = sbr.rel (0) target = $region9
  $region8: #{tpu_custom_call.1} parent=0 // pred_region
    _
  $region9: #{tpu_custom_call.1} parent=0 // pred_fallthru
    _
  // Predicated region
  $region10: #{tpu_custom_call.1} parent=0 // pred_check
    _
  $region11: #{tpu_custom_call.1} parent=0 // pred_check_branch
    %13 = sbr.rel (0) target = $region13
  $region12: #{tpu_custom_call.1} parent=0 // pred_region
    _
  $region13: #{tpu_custom_call.1} parent=0 // pred_fallthru
    _
  %v14 = vld [vmem:[%s0] sm:$0xff]
  %v15 = vld [vmem:[%s1] sm:$0xff]
  %v16 = vld [vmem:[%s1 + $0x8] sm:$0xff]
  %v17 = vld [vmem:[%s1 + $0x10] sm:$0xff]
  %v18 = vld [vmem:[%s1 + $0x18] sm:$0xff]
  %v19 = vld [vmem:[%s2] sm:$0x1]
  %v21 = vperm.slane %v19, 0
  %vm23 = vcmask 261120
  %v25 = vsel %vm23, %v14, 0
  %27 = vmatpush.msra.mxu0 0.0
  %28 = vmatpush.msra.mxu0 0.0
  %29 = vmatpush.msra.mxu0 0.0
  %30 = vmatpush.msra.mxu0 0.0
  %31 = vmatpush.msra.mxu0 0.0
  %32 = vmatpush.msra.mxu0 0.0
  %33 = vmatpush.msra.mxu0 0.0
  %34 = vmatpush.msra.mxu0 0.0
  %35 = vmatpush.msra.mxu0 0.0
  %36 = vmatpush.msra.mxu0 0.0
  %37 = vmatpush.msra.mxu0 0.0
  %38 = vmatpush.msra.mxu0 0.0
  %39 = vmatpush.msra.mxu0 %v18
  %40 = vmatpush.msra.mxu0 %v17
  %41 = vmatpush.msra.mxu0 %v16
  %42 = vmatpush.msra.mxu0 %v15
  %43 = vmatmul.f32.gmra.mxu0 %v25
  %v44 = vpop.f32.mrf.mxu0
  %v45 = vadd.f32 %v21, %v44
  %46 = vdwg.mxu0
  %vm47 = vcmask 31744
  %48 = vst.msk [vmem:[%s3] sm:$0xff] %vm47, %v45
  // Predicated region
  $region14: #{tpu_custom_call.1} parent=0 // pred_check
    _
  $region15: #{tpu_custom_call.1} parent=0 // pred_check_branch
    %50 = sbr.rel (0) target = $region17
  $region16: #{tpu_custom_call.1} parent=0 // pred_region
    _
  $region17: #{tpu_custom_call.1} parent=0 // pred_fallthru
    _
  // Predicated region
  $region18: #{tpu_custom_call.1} parent=0 // pred_check
    _
  $region19: #{tpu_custom_call.1} parent=0 // pred_check_branch
    %52 = sbr.rel (0) target = $region21
  $region20: #{tpu_custom_call.1} parent=0 // pred_region
    _
  $region21: #{tpu_custom_call.1} parent=0 // pred_fallthru
    _

</llo_original>
